<compile_context>
chip_gen: v6e
topology: v6e:2x2x1
jax: 0.10.0
libtpu: 0.0.40
codegen_flags: <defaults>
</compile_context>

<pallas_src>
import math

import jax
import jax.numpy as jnp
from jax.experimental import pallas as pl
from jax.experimental.pallas import tpu as pltpu

# VMEM policy: safe on v5e/v6e (128 MiB physical, 16/32 MiB default scoped)
# and v7x (64 MiB physical, 32 MiB default scoped).
_VMEM_LIMIT_BYTES = 40 << 20     # explicit scoped-VMEM limit for both calls
_SEQ_VMEM_BUDGET = 28 << 20      # target usage when deriving the seq row tile
_PAIR_BLOCK_BUDGET = 8 << 20     # per-step pair output block (x2 when buffered)


def _round_up(a, b):
    return (a + b - 1) // b * b


# ---------------------------------------------------------------------------
# Kernel 1: fused  emb_seq(x) + MLP(SiLU)(sinusoidal_embedding(t))
# Processes a tile of `tm` (batch*seq) rows per grid step.
# ---------------------------------------------------------------------------
def _seq_kernel(x_ref, t_ref, freqs_ref, wseq_ref, w1_ref, b1_ref,
                w2_ref, bout_ref, o_ref):
    t = t_ref[...]                      # (tm, 1)    f32
    freqs = freqs_ref[...]              # (1, half)  f32

    # Sinusoidal frequency embedding (trig in f32; bf16 only at MXU boundary).
    args = t * freqs                    # (tm, half)
    emb = jnp.concatenate([jnp.cos(args), jnp.sin(args)],
                          axis=-1).astype(jnp.bfloat16)   # (tm, 2*half)

    # MLP: Linear(freq -> hidden) -> SiLU -> Linear(hidden -> dim)
    h = jnp.dot(emb, w1_ref[...],
                preferred_element_type=jnp.float32) + b1_ref[...]
    h = h * jax.nn.sigmoid(h)           # SiLU (f32)
    t_pos = jnp.dot(h.astype(jnp.bfloat16), w2_ref[...],
                    preferred_element_type=jnp.float32)

    # emb_seq linear on x (native-dtype load, bf16 MXU inputs, f32 accumulate)
    xs = jnp.dot(x_ref[...].astype(jnp.bfloat16), wseq_ref[...],
                 preferred_element_type=jnp.float32)

    # bout = b_seq + b2, folded once in the wrapper
    o_ref[...] = (xs + t_pos + bout_ref[...]).astype(o_ref.dtype)


def _choose_tm(N, dim, half, hidden, x_bytes, out_bytes,
               target=1024, budget=_SEQ_VMEM_BUDGET):
    """Row tile for the seq kernel.

    Picks the largest multiple-of-8 tile that (a) fits the VMEM budget with
    double-buffered x / t / out tiles plus the constant weights, (b) is at
    most `target`, and (c) divides N exactly whenever possible so the wrapper
    never needs a pad + slice HBM round trip.  Returns (tm, N_padded).
    """
    per_row = 2 * (dim * x_bytes + 4 + dim * out_bytes)      # double-buffered
    const = 2 * (half * 4 + dim * dim * 2 + (2 * half) * hidden * 2
                 + hidden * 4 + hidden * dim * 2 + dim * 4)  # weights/biases
    cap = max(8, (budget - const) // per_row)
    tm = min(target, cap, N)
    tm -= tm % 8
    tm = max(tm, 8)
    if N <= tm:
        return N, N                 # single full-extent block (always legal)
    for cand in range(tm, 7, -8):   # prefer an exact divisor of N
        if N % cand == 0:
            return cand, N
    return tm, _round_up(N, tm)     # fallback: pad the tail (rare)


# ---------------------------------------------------------------------------
# Kernel 2a: pair embedding, natural layout (d_pair is a multiple of 128).
#   out[b, i, j, k] = t[b, j] * wl[k] + t[b, i] * wr[k]
# Blocks: t_j (1,1,L,1), t_i (1,ti,1,1), wl/wr (1,d_pair), out (1,ti,L,d_pair)
# ---------------------------------------------------------------------------
def _pair_kernel_4d(t_j_ref, t_i_ref, wl_ref, wr_ref, o_ref):
    left = t_j_ref[0] * wl_ref[...][None]     # (1, L, 1)*(1, 1, dp) -> (1, L, dp)
    right = t_i_ref[0] * wr_ref[...][None]    # (ti, 1, 1)*(1, 1, dp) -> (ti, 1, dp)
    o_ref[0] = (left + right).astype(o_ref.dtype)


# ---------------------------------------------------------------------------
# Kernel 2b: pair embedding, lane-dense slab layout (d_pair < 128).
#   out[b, i, j*d_pair + k] = t[b, j] * wl[k] + t[b, i] * wr[k]
# Inputs pre-laid-out in the wrapper so the kernel is a pure broadcast MAD
# into a (ti, L*d_pair) slab (full-lane stores).
# ---------------------------------------------------------------------------
def _pair_kernel_slab(trep_ref, t_i_ref, wl_ref, wr_ref, o_ref):
    left = trep_ref[0] * wl_ref[...]          # (1, L*dp)
    right = t_i_ref[0] * wr_ref[...]          # (ti, 1)*(1, L*dp) -> (ti, L*dp)
    o_ref[0] = (left + right).astype(o_ref.dtype)


def _choose_ti(L, d_pair, itemsize, max_block_bytes=_PAIR_BLOCK_BUDGET):
    """Largest i-tile that divides L, obeys the sublane rule, fits the budget."""
    row_bytes = L * d_pair * itemsize
    candidates = [L] + [ti for ti in range(8, L, 8) if L % ti == 0]
    fitting = [ti for ti in candidates if ti * row_bytes <= max_block_bytes]
    if fitting:
        return max(fitting)
    return min(candidates)          # nothing fits the budget: smallest legal


def _pair_forward(t, wl, wr, out_dtype):
    B, L = t.shape
    d_pair = wl.shape[1]
    itemsize = jnp.dtype(out_dtype).itemsize
    ti = _choose_ti(L, d_pair, itemsize)
    tf = t.astype(jnp.float32)
    cparams = pltpu.CompilerParams(
        dimension_semantics=("parallel", "parallel"),
        vmem_limit_bytes=_VMEM_LIMIT_BYTES)

    if d_pair % 128 == 0:
        # Natural 4-D output block; last dim already lane-dense, no plumbing.
        t_j = tf.reshape(B, 1, L, 1)
        t_i = tf.reshape(B, L, 1, 1)
        return pl.pallas_call(
            _pair_kernel_4d,
            out_shape=jax.ShapeDtypeStruct((B, L, L, d_pair), out_dtype),
            grid=(B, L // ti),
            in_specs=[
                pl.BlockSpec((1, 1, L, 1), lambda b, ii: (b, 0, 0, 0)),
                pl.BlockSpec((1, ti, 1, 1), lambda b, ii: (b, ii, 0, 0)),
                pl.BlockSpec((1, d_pair), lambda b, ii: (0, 0)),
                pl.BlockSpec((1, d_pair), lambda b, ii: (0, 0)),
            ],
            out_specs=pl.BlockSpec((1, ti, L, d_pair),
                                   lambda b, ii: (b, ii, 0, 0)),
            compiler_params=cparams,
        )(t_j, t_i, wl.astype(jnp.float32), wr.astype(jnp.float32))

    # Lane-dense slab layout for small d_pair.
    # t_rep[b, j*d_pair + k] = t[b, j];  wl_t[0, j*d_pair + k] = wl[k]
    t_rep = jnp.repeat(tf, d_pair, axis=1).reshape(B, 1, L * d_pair)
    t_i = tf.reshape(B, L, 1)
    wl_t = jnp.tile(wl.astype(jnp.float32), (1, L))
    wr_t = jnp.tile(wr.astype(jnp.float32), (1, L))
    out = pl.pallas_call(
        _pair_kernel_slab,
        out_shape=jax.ShapeDtypeStruct((B, L, L * d_pair), out_dtype),
        grid=(B, L // ti),
        in_specs=[
            pl.BlockSpec((1, 1, L * d_pair), lambda b, ii: (b, 0, 0)),
            pl.BlockSpec((1, ti, 1), lambda b, ii: (b, ii, 0)),
            pl.BlockSpec((1, L * d_pair), lambda b, ii: (0, 0)),
            pl.BlockSpec((1, L * d_pair), lambda b, ii: (0, 0)),
        ],
        out_specs=pl.BlockSpec((1, ti, L * d_pair), lambda b, ii: (b, ii, 0)),
        compiler_params=cparams,
    )(t_rep, t_i, wl_t, wr_t)
    return out.reshape(B, L, L, d_pair)   # free metadata reshape


# ---------------------------------------------------------------------------
# Wrapper
# ---------------------------------------------------------------------------
def embedding_forward(x, t, params, *, tm=1024,
                      seq_out_dtype=None, pair_out_dtype=None):
    """Forward pass of `Embedding` (eval mode, dropout = identity).

    seq_out_dtype defaults to x.dtype; pair_out_dtype defaults to f32
    (module semantics).  Pass jnp.bfloat16 for either to halve writeback
    bytes on the mem-bound output streams if the consumer tolerates it.
    """
    B, L, dim = x.shape
    half = params["freqs"].shape[1]
    hidden = params["w1"].shape[1]
    seq_out_dtype = x.dtype if seq_out_dtype is None else seq_out_dtype
    pair_out_dtype = jnp.float32 if pair_out_dtype is None else pair_out_dtype

    # ----- seq kernel: (B*L, dim) rows; x stays in its native dtype.
    N = B * L
    tm_eff, N_pad = _choose_tm(
        N, dim, half, hidden,
        jnp.dtype(x.dtype).itemsize, jnp.dtype(seq_out_dtype).itemsize,
        target=tm)

    x2 = x.reshape(N, dim)                    # no up-cast: native dtype load
    t2 = t.reshape(N, 1).astype(jnp.float32)  # tiny; module uses t.float()
    if N_pad != N:                            # rare fallback path only
        x2 = jnp.pad(x2, ((0, N_pad - N), (0, 0)))
        t2 = jnp.pad(t2, ((0, N_pad - N), (0, 0)))

    # One-time weight prep (layout plumbing, not per-element compute):
    wseq_bf = params["w_seq"].astype(jnp.bfloat16)
    w1_bf = params["w1"].astype(jnp.bfloat16)        # (2*half, hidden)
    w2_bf = params["w2"].astype(jnp.bfloat16)
    b1 = params["b1"].astype(jnp.float32)
    b_out = (params["b_seq"] + params["b2"]).astype(jnp.float32)  # fold biases
    freqs = params["freqs"].astype(jnp.float32)

    x_out = pl.pallas_call(
        _seq_kernel,
        out_shape=jax.ShapeDtypeStruct((N_pad, dim), seq_out_dtype),
        grid=(N_pad // tm_eff,),
        in_specs=[
            pl.BlockSpec((tm_eff, dim), lambda i: (i, 0)),
            pl.BlockSpec((tm_eff, 1), lambda i: (i, 0)),
            pl.BlockSpec((1, half), lambda i: (0, 0)),
            pl.BlockSpec((dim, dim), lambda i: (0, 0)),
            pl.BlockSpec((2 * half, hidden), lambda i: (0, 0)),
            pl.BlockSpec((1, hidden), lambda i: (0, 0)),
            pl.BlockSpec((hidden, dim), lambda i: (0, 0)),
            pl.BlockSpec((1, dim), lambda i: (0, 0)),
        ],
        out_specs=pl.BlockSpec((tm_eff, dim), lambda i: (i, 0)),
        compiler_params=pltpu.CompilerParams(
            dimension_semantics=("parallel",),
            vmem_limit_bytes=_VMEM_LIMIT_BYTES),
    )(x2, t2, freqs, wseq_bf, w1_bf, b1, w2_bf, b_out)
    if N_pad != N:
        x_out = x_out[:N]
    x_out = x_out.reshape(B, L, dim)

    # ----- pair kernel
    t_out = _pair_forward(t, params["w_pair_left"], params["w_pair_right"],
                          pair_out_dtype)
    return x_out, t_out


# ---------------------------------------------------------------------------
# Deterministic parameter init (shapes match the PyTorch __init__)
# ---------------------------------------------------------------------------
def init_params(key, dim, d_pair, hidden_size=32, frequency_embedding_size=256):
    ks = jax.random.split(key, 8)
    half = frequency_embedding_size // 2
    freqs = jnp.exp(-math.log(10000.0)
                    * jnp.arange(half, dtype=jnp.float32) / half)
    return {
        "freqs": freqs.reshape(1, half),
        # emb_seq: Linear(dim, dim) -> stored as (in, out) for x @ W + b
        "w_seq": 0.05 * jax.random.normal(ks[0], (dim, dim), jnp.float32),
        "b_seq": 0.05 * jax.random.normal(ks[1], (1, dim), jnp.float32),
        # pos.mlp[0]: Linear(freq, hidden)
        "w1": 0.05 * jax.random.normal(
            ks[2], (frequency_embedding_size, hidden_size), jnp.float32),
        "b1": 0.05 * jax.random.normal(ks[3], (1, hidden_size), jnp.float32),
        # pos.mlp[2]: Linear(hidden, dim)
        "w2": 0.05 * jax.random.normal(ks[4], (hidden_size, dim), jnp.float32),
        "b2": 0.05 * jax.random.normal(ks[5], (1, dim), jnp.float32),
        # nn.Embedding(1, d_pair).weight  -> (1, d_pair)
        "w_pair_left": jax.random.normal(ks[6], (1, d_pair), jnp.float32),
        "w_pair_right": jax.random.normal(ks[7], (1, d_pair), jnp.float32),
    }


# ---------------------------------------------------------------------------
# Pure-JAX f32 reference (mirrors the PyTorch forward) for a correctness check
# ---------------------------------------------------------------------------
def reference_forward(x, t, p):
    freqs = p["freqs"][0]
    args = t[:, :, None].astype(jnp.float32) * freqs[None, None, :]
    emb = jnp.concatenate([jnp.cos(args), jnp.sin(args)], axis=-1)
    h = emb @ p["w1"] + p["b1"][0]
    h = h * jax.nn.sigmoid(h)
    t_pos = h @ p["w2"] + p["b2"][0]
    x_out = x.astype(jnp.float32) @ p["w_seq"] + p["b_seq"][0] + t_pos
    tt = t[:, :, None].astype(jnp.float32)
    left = (tt @ p["w_pair_left"])[:, None]       # (B, 1, L, d_pair)
    right = (tt @ p["w_pair_right"])[:, :, None]  # (B, L, 1, d_pair)
    return x_out, left + right


if __name__ == "__main__":
    B, L, dim, d_pair = 2, 8, 32, 16
    hidden_size, freq_size = 32, 256

    key = jax.random.PRNGKey(0)
    kx, kt, kp = jax.random.split(key, 3)
    x = jax.random.normal(kx, (B, L, dim), jnp.float32)
    t = jax.random.uniform(kt, (B, L), jnp.float32, minval=0.0, maxval=100.0)
    params = init_params(kp, dim, d_pair, hidden_size, freq_size)

    # Default dtypes (seq follows x.dtype=f32, pair f32): slab pair path.
    x_out, t_out = embedding_forward(x, t, params)
    jax.block_until_ready((x_out, t_out))
    x_ref, t_ref = reference_forward(x, t, params)
    assert x_out.shape == (B, L, dim) and t_out.shape == (B, L, L, d_pair)
    # seq path uses bf16 MXU inputs (f32 accumulation) -> bf16-level tolerance
    assert jnp.allclose(x_out, x_ref, atol=5e-2, rtol=5e-2)
    # pair path is pure f32 -> tight tolerance
    assert jnp.allclose(t_out, t_ref, atol=1e-5, rtol=1e-5)

    # Lane-aligned pair path (d_pair % 128 == 0) + bf16 outputs (halved
    # writeback bytes on both output streams).
    d_pair2 = 128
    params2 = init_params(kp, dim, d_pair2, hidden_size, freq_size)
    x2_out, t2_out = embedding_forward(
        x, t, params2, seq_out_dtype=jnp.bfloat16, pair_out_dtype=jnp.bfloat16)
    jax.block_until_ready((x2_out, t2_out))
    x2_ref, t2_ref = reference_forward(x, t, params2)
    assert x2_out.dtype == jnp.bfloat16 and t2_out.dtype == jnp.bfloat16
    assert x2_out.shape == (B, L, dim) and t2_out.shape == (B, L, L, d_pair2)
    assert jnp.allclose(x2_out.astype(jnp.float32), x2_ref, atol=1e-1, rtol=1e-1)
    assert jnp.allclose(t2_out.astype(jnp.float32), t2_ref, atol=1e-2, rtol=1e-2)

    print("KERNEL_OK")
</pallas_src>

<mosaic_0001>
module attributes {stable_mosaic.version = 11 : i64} {
  func.func @_seq_kernel(%arg0: i32, %arg1: memref<16x32xf32, #tpu.memory_space<vmem>>, %arg2: memref<16x1xf32, #tpu.memory_space<vmem>>, %arg3: memref<1x128xf32, #tpu.memory_space<vmem>>, %arg4: memref<32x32xbf16, #tpu.memory_space<vmem>>, %arg5: memref<256x32xbf16, #tpu.memory_space<vmem>>, %arg6: memref<1x32xf32, #tpu.memory_space<vmem>>, %arg7: memref<32x32xbf16, #tpu.memory_space<vmem>>, %arg8: memref<1x32xf32, #tpu.memory_space<vmem>>, %arg9: memref<16x32xf32, #tpu.memory_space<vmem>>) attributes {dimension_semantics = [#tpu.dimension_semantics<parallel>], iteration_bounds = array<i64: 1>, scalar_prefetch = 0 : i64, scratch_operands = 0 : i64, tpu.core_type = #tpu.core_type<tc>, window_params = [{transform_indices = @transform_0, window_bounds = array<i64: 16, 32>}, {transform_indices = @transform_1, window_bounds = array<i64: 16, 1>}, {pipeline_mode = #tpu.pipeline_mode<synchronous>, transform_indices = @transform_2, window_bounds = array<i64: 1, 128>}, {pipeline_mode = #tpu.pipeline_mode<synchronous>, transform_indices = @transform_3, window_bounds = array<i64: 32, 32>}, {pipeline_mode = #tpu.pipeline_mode<synchronous>, transform_indices = @transform_4, window_bounds = array<i64: 256, 32>}, {pipeline_mode = #tpu.pipeline_mode<synchronous>, transform_indices = @transform_5, window_bounds = array<i64: 1, 32>}, {pipeline_mode = #tpu.pipeline_mode<synchronous>, transform_indices = @transform_6, window_bounds = array<i64: 32, 32>}, {pipeline_mode = #tpu.pipeline_mode<synchronous>, transform_indices = @transform_7, window_bounds = array<i64: 1, 32>}, {transform_indices = @transform_8, window_bounds = array<i64: 16, 32>}]} {
    %c0 = arith.constant 0 : index
    %c0_0 = arith.constant 0 : index
    %0 = vector.load %arg2[%c0, %c0_0] : memref<16x1xf32, #tpu.memory_space<vmem>>, vector<16x1xf32>
    %c0_1 = arith.constant 0 : index
    %c0_2 = arith.constant 0 : index
    %1 = vector.load %arg3[%c0_1, %c0_2] : memref<1x128xf32, #tpu.memory_space<vmem>>, vector<1x128xf32>
    %2 = vector.broadcast %0 : vector<16x1xf32> to vector<16x128xf32>
    %3 = vector.broadcast %1 : vector<1x128xf32> to vector<16x128xf32>
    %4 = arith.mulf %2, %3 : vector<16x128xf32>
    %5 = math.cos %4 : vector<16x128xf32>
    %6 = math.sin %4 : vector<16x128xf32>
    %7 = tpu.concatenate %5, %6 in 1 : vector<16x128xf32>, vector<16x128xf32> -> vector<16x256xf32>
    %8 = arith.truncf %7 : vector<16x256xf32> to vector<16x256xbf16>
    %c0_3 = arith.constant 0 : index
    %c0_4 = arith.constant 0 : index
    %9 = vector.load %arg5[%c0_3, %c0_4] : memref<256x32xbf16, #tpu.memory_space<vmem>>, vector<256x32xbf16>
    %cst = arith.constant dense<0.000000e+00> : vector<16x32xf32>
    %10 = tpu.matmul %8, %9, %cst {dimension_numbers = #tpu.dot_dimension_numbers<[1], [0], [0], [1], [0, 0, 1, 1], [], []>} : vector<16x256xbf16>, vector<256x32xbf16>, vector<16x32xf32> -> vector<16x32xf32>
    %c0_5 = arith.constant 0 : index
    %c0_6 = arith.constant 0 : index
    %11 = vector.load %arg6[%c0_5, %c0_6] : memref<1x32xf32, #tpu.memory_space<vmem>>, vector<1x32xf32>
    %12 = vector.broadcast %11 : vector<1x32xf32> to vector<16x32xf32>
    %13 = arith.addf %10, %12 : vector<16x32xf32>
    %14 = arith.negf %13 : vector<16x32xf32>
    %15 = math.exp %14 : vector<16x32xf32>
    %cst_7 = arith.constant 1.000000e+00 : f32
    %16 = vector.broadcast %cst_7 : f32 to vector<16x32xf32>
    %17 = arith.addf %16, %15 : vector<16x32xf32>
    %18 = arith.divf %16, %17 : vector<16x32xf32>
    %19 = arith.mulf %13, %18 : vector<16x32xf32>
    %20 = arith.truncf %19 : vector<16x32xf32> to vector<16x32xbf16>
    %c0_8 = arith.constant 0 : index
    %c0_9 = arith.constant 0 : index
    %21 = vector.load %arg7[%c0_8, %c0_9] : memref<32x32xbf16, #tpu.memory_space<vmem>>, vector<32x32xbf16>
    %cst_10 = arith.constant dense<0.000000e+00> : vector<16x32xf32>
    %22 = tpu.matmul %20, %21, %cst_10 {dimension_numbers = #tpu.dot_dimension_numbers<[1], [0], [0], [1], [0, 0, 1, 1], [], []>} : vector<16x32xbf16>, vector<32x32xbf16>, vector<16x32xf32> -> vector<16x32xf32>
    %c0_11 = arith.constant 0 : index
    %c0_12 = arith.constant 0 : index
    %23 = vector.load %arg1[%c0_11, %c0_12] : memref<16x32xf32, #tpu.memory_space<vmem>>, vector<16x32xf32>
    %24 = arith.truncf %23 : vector<16x32xf32> to vector<16x32xbf16>
    %c0_13 = arith.constant 0 : index
    %c0_14 = arith.constant 0 : index
    %25 = vector.load %arg4[%c0_13, %c0_14] : memref<32x32xbf16, #tpu.memory_space<vmem>>, vector<32x32xbf16>
    %cst_15 = arith.constant dense<0.000000e+00> : vector<16x32xf32>
    %26 = tpu.matmul %24, %25, %cst_15 {dimension_numbers = #tpu.dot_dimension_numbers<[1], [0], [0], [1], [0, 0, 1, 1], [], []>} : vector<16x32xbf16>, vector<32x32xbf16>, vector<16x32xf32> -> vector<16x32xf32>
    %27 = arith.addf %26, %22 : vector<16x32xf32>
    %c0_16 = arith.constant 0 : index
    %c0_17 = arith.constant 0 : index
    %28 = vector.load %arg8[%c0_16, %c0_17] : memref<1x32xf32, #tpu.memory_space<vmem>>, vector<1x32xf32>
    %29 = vector.broadcast %28 : vector<1x32xf32> to vector<16x32xf32>
    %30 = arith.addf %27, %29 : vector<16x32xf32>
    %c0_18 = arith.constant 0 : index
    %c0_19 = arith.constant 0 : index
    %31 = vector.load %arg9[%c0_18, %c0_19] : memref<16x32xf32, #tpu.memory_space<vmem>>, vector<16x32xf32>
    tpu.vector_store %arg9[%c0_18, %c0_19], %30 {strides = array<i32>} : memref<16x32xf32, #tpu.memory_space<vmem>>, vector<16x32xf32>,
    return
  }
  func.func @transform_0(%arg0: i32) -> (i32, i32) {
    %c0_i32 = arith.constant 0 : i32
    %c0_i32_0 = arith.constant 0 : i32
    return %arg0, %c0_i32 : i32, i32
  }
  func.func @transform_1(%arg0: i32) -> (i32, i32) {
    %c0_i32 = arith.constant 0 : i32
    %c0_i32_0 = arith.constant 0 : i32
    return %arg0, %c0_i32 : i32, i32
  }
  func.func @transform_2(%arg0: i32) -> (i32, i32) {
    %c0_i32 = arith.constant 0 : i32
    %c0_i32_0 = arith.constant 0 : i32
    %c0_i32_1 = arith.constant 0 : i32
    return %c0_i32, %c0_i32_0 : i32, i32
  }
  func.func @transform_3(%arg0: i32) -> (i32, i32) {
    %c0_i32 = arith.constant 0 : i32
    %c0_i32_0 = arith.constant 0 : i32
    %c0_i32_1 = arith.constant 0 : i32
    return %c0_i32, %c0_i32_0 : i32, i32
  }
  func.func @transform_4(%arg0: i32) -> (i32, i32) {
    %c0_i32 = arith.constant 0 : i32
    %c0_i32_0 = arith.constant 0 : i32
    %c0_i32_1 = arith.constant 0 : i32
    return %c0_i32, %c0_i32_0 : i32, i32
  }
  func.func @transform_5(%arg0: i32) -> (i32, i32) {
    %c0_i32 = arith.constant 0 : i32
    %c0_i32_0 = arith.constant 0 : i32
    %c0_i32_1 = arith.constant 0 : i32
    return %c0_i32, %c0_i32_0 : i32, i32
  }
  func.func @transform_6(%arg0: i32) -> (i32, i32) {
    %c0_i32 = arith.constant 0 : i32
    %c0_i32_0 = arith.constant 0 : i32
    %c0_i32_1 = arith.constant 0 : i32
    return %c0_i32, %c0_i32_0 : i32, i32
  }
  func.func @transform_7(%arg0: i32) -> (i32, i32) {
    %c0_i32 = arith.constant 0 : i32
    %c0_i32_0 = arith.constant 0 : i32
    %c0_i32_1 = arith.constant 0 : i32
    return %c0_i32, %c0_i32_0 : i32, i32
  }
  func.func @transform_8(%arg0: i32) -> (i32, i32) {
    %c0_i32 = arith.constant 0 : i32
    %c0_i32_0 = arith.constant 0 : i32
    return %arg0, %c0_i32 : i32, i32
  }
}

</mosaic_0001>

<llo_original>
// kernel: tpu_custom_call.1
$region0: #{tpu_custom_call.1}
  #allocation0 [shape = 'u32[]', space=smem, size = 0x4, offset = 0x4, fixed_abs, tag = 'smem constant byte address 0x4 - core index']
  #allocation1 [shape = 'u32[144,128]{1,0:T(1,128)}', space=vmem, size = 0x12000, scoped, tag = 'internal scratch']
  %s0 = inlined_call_operand.vmem [shape: f32[16,32], index: 0, kind: input, shape index: {}]
  %s1 = inlined_call_operand.vmem [shape: f32[16,1], index: 1, kind: input, shape index: {}]
  %s2 = inlined_call_operand.vmem [shape: f32[1,128], index: 2, kind: input, shape index: {}]
  %s3 = inlined_call_operand.vmem [shape: bf16[32,32], index: 3, kind: input, shape index: {}]
  %s4 = inlined_call_operand.vmem [shape: bf16[256,32], index: 4, kind: input, shape index: {}]
  %s5 = inlined_call_operand.vmem [shape: f32[1,32], index: 5, kind: input, shape index: {}]
  %s6 = inlined_call_operand.vmem [shape: bf16[32,32], index: 6, kind: input, shape index: {}]
  %s7 = inlined_call_operand.vmem [shape: f32[1,32], index: 7, kind: input, shape index: {}]
  %s8 = inlined_call_operand.hbm [shape: f32[16,32], index: 8, kind: output, shape index: {}]
  %s9 = sld [smem:[#allocation0]]
  $region42: #{tpu_custom_call.1} parent=0
    _
  %s11 = ssub.s32 1, %s9
  %s12 = scalar_select 0, %s11, %s9
  $region1: #{tpu_custom_call.1} parent=0
    #allocation2 [shape = 'u8[8192]{0}', space=vmem, size = 0x2000, scoped, tag = 'output window, operand 0, single buffered']
    #allocation3 [shape = 's32[1]{0}', space=sflag, size = 0x4, scoped, tag = 'scoped memory for tpu_custom_call.1']
    %13 = vsyncpa [#allocation3], 0
    // Predicated region
    $region2: #{tpu_custom_call.1} parent=1 // pred_check
      _
    $region3: #{tpu_custom_call.1} parent=1 // pred_check_branch
      %15 = sbr.rel (0) target = $region5
    $region4: #{tpu_custom_call.1} parent=1 // pred_region
      _
    $region5: #{tpu_custom_call.1} parent=1 // pred_fallthru
      _
    // Predicated region
    $region6: #{tpu_custom_call.1} parent=1 // pred_check
      _
    $region7: #{tpu_custom_call.1} parent=1 // pred_check_branch
      %17 = sbr.rel (0) target = $region9
    $region8: #{tpu_custom_call.1} parent=1 // pred_region
      _
    $region9: #{tpu_custom_call.1} parent=1 // pred_fallthru
      _
    // Predicated region
    $region10: #{tpu_custom_call.1} parent=1 // pred_check
      _
    $region11: #{tpu_custom_call.1} parent=1 // pred_check_branch
      %19 = sbr.rel (0) target = $region13
    $region12: #{tpu_custom_call.1} parent=1 // pred_region
      _
    $region13: #{tpu_custom_call.1} parent=1 // pred_fallthru
      _
    // Predicated region
    $region14: #{tpu_custom_call.1} parent=1 // pred_check
      _
    $region15: #{tpu_custom_call.1} parent=1 // pred_check_branch
      %21 = sbr.rel (0) target = $region17
    $region16: #{tpu_custom_call.1} parent=1 // pred_region
      _
    $region17: #{tpu_custom_call.1} parent=1 // pred_fallthru
      _
    // Predicated region
    $region18: #{tpu_custom_call.1} parent=1 // pred_check
      _
    $region19: #{tpu_custom_call.1} parent=1 // pred_check_branch
      %23 = sbr.rel (0) target = $region21
    $region20: #{tpu_custom_call.1} parent=1 // pred_region
      _
    $region21: #{tpu_custom_call.1} parent=1 // pred_fallthru
      _
    // Predicated region
    $region22: #{tpu_custom_call.1} parent=1 // pred_check
      _
    $region23: #{tpu_custom_call.1} parent=1 // pred_check_branch
      %25 = sbr.rel (0) target = $region25
    $region24: #{tpu_custom_call.1} parent=1 // pred_region
      _
    $region25: #{tpu_custom_call.1} parent=1 // pred_fallthru
      _
    // Predicated region
    $region26: #{tpu_custom_call.1} parent=1 // pred_check
      _
    $region27: #{tpu_custom_call.1} parent=1 // pred_check_branch
      %27 = sbr.rel (0) target = $region29
    $region28: #{tpu_custom_call.1} parent=1 // pred_region
      _
    $region29: #{tpu_custom_call.1} parent=1 // pred_fallthru
      _
    // Predicated region
    $region30: #{tpu_custom_call.1} parent=1 // pred_check
      _
    $region31: #{tpu_custom_call.1} parent=1 // pred_check_branch
      %29 = sbr.rel (0) target = $region33
    $region32: #{tpu_custom_call.1} parent=1 // pred_region
      _
    $region33: #{tpu_custom_call.1} parent=1 // pred_fallthru
      _
    %v31 = vld [vmem:[%s1] sm:$0xff]
    %v32 = vld [vmem:[%s1 + $0x8] sm:$0xff]
    %v33 = vld [vmem:[%s2] sm:$0x1]
    %35 = vset.pattern.permute.xlu0 0
    %36 = vperm.xlu0 %35, %v31
    %v37 = vpop.permute.xlu0 %36
    %40 = vset.pattern.permute.xlu0 0
    %41 = vperm.xlu0 %40, %v32
    %v42 = vpop.permute.xlu0 %41
    %v45 = vlaneseq
    %v46 = vshrl.u32 %v45, 7
    %v47 = vsub.s32 0, %v46
    %v48 = vrot.slane %v33, %v47
    %v50 = vmul.f32 %v37, %v48
    %v51 = vmul.f32 %v42, %v48
    %v52 = vand.u32 2147483647, %v50
    %vm53 = vcmp.le.f32.partialorder %v52, 0.7853982
    %vm54 = vcmp.lt.s32.totalorder %v50, 0
    %v55 = vand.u32 %v50, 2139095040
    %v56 = vshrl.u32 %v55, 23
    %v57 = vsub.s32 %v56, 127
    %v58 = vand.u32 2147483647, %v50
    %v59 = vand.u32 %v58, 8388607
    %v60 = vor.u32 %v59, 8388608
    %v61 = vsub.s32 0, %v60
    %v62 = vadd.s32 %v57, 1
    %vm63 = vcmp.gt.s32.totalorder %v62, 0
    %v64 = vsel %vm63, %v62, 0
    %v65 = vshrl.u32 %v64, 5
    %v66 = vand.u32 %v64, 31
    %v67 = vsub.s32 32, %v66
    %v68 = vshrl.u32 683565275, %v67
    %v69 = vshll.u32 683565275, %v66
    %v70 = vshrl.u32 2475754826, %v67
    %v71 = vor.u32 %v69, %v70
    %v72 = vshll.u32 2475754826, %v66
    %v73 = vshrl.u32 2131351028, %v67
    %v74 = vor.u32 %v72, %v73
    %v75 = vshll.u32 2131351028, %v66
    %v76 = vshrl.u32 2102212464, %v67
    %v77 = vor.u32 %v75, %v76
    %v78 = vshll.u32 2102212464, %v66
    %v79 = vshrl.u32 920167782, %v67
    %v80 = vor.u32 %v78, %v79
    %v81 = vshll.u32 920167782, %v66
    %v82 = vshrl.u32 1326507024, %v67
    %v83 = vor.u32 %v81, %v82
    %vm84 = vcmp.lt.s32.totalorder %v65, 1
    %vm85 = vcmp.lt.s32.totalorder %v65, 2
    %vm86 = vcmp.lt.s32.totalorder %v65, 3
    %vm87 = vcmp.lt.s32.totalorder %v65, 4
    %v88 = vsel %vm84, %v68, %v71
    %v89 = vsel %vm87, %v77, 2102212464
    %v90 = vsel %vm86, %v74, %v89
    %v91 = vsel %vm85, %v88, %v90
    %v92 = vsel %vm84, %v71, %v74
    %v93 = vsel %vm87, %v80, 920167782
    %v94 = vsel %vm86, %v77, %v93
    %v95 = vsel %vm85, %v92, %v94
    %v96 = vsel %vm84, %v74, %v77
    %v97 = vsel %vm87, %v83, 1326507024
    %v98 = vsel %vm86, %v80, %v97
    %v99 = vsel %vm85, %v96, %v98
    %v100 = vshll.u32 %v60, 8
    %v101 = vmul.u32.u64.compose %v100, %v99
    %v102 = vextract.low.u32 %v101
    %v103 = vextract.high.u32 %v101
    %v104 = vmul.u32.u64.compose %v100, %v95
    %v105 = vextract.low.u32 %v104
    %v106 = vextract.high.u32 %v104
    %v107 = vmul.u32 %v100, %v91
    %v108 = vadd.s32 %v103, %v105
    %vm109 = vc.u32 %v103, %v105
    %v110 = vadd.s32 %v106, 1
    %v111 = vsel %vm109, %v110, %v106
    %v112 = vadd.s32 %v107, %v111
    %v113 = vadd.s32 %v112, 536870912
    %v114 = vshrl.u32 %v113, 30
    %v115 = vshll.u32 %v114, 30
    %v116 = vsub.s32 %v112, %v115
    %vm117 = vcmp.lt.s32.totalorder %v116, 0
    %v118 = vsub.s32 0, %v116
    %v119 = vsel %vm117, %v118, %v116
    %v120 = vclz %v119
    %v121 = vsub.s32 %v120, 2
    %vm122 = vcmp.gt.s32.totalorder 0, %v121
    %v123 = vsel %vm122, 0, %v121
    %v124 = vsub.s32 32, %v123
    %v125 = vshll.u32 %v116, %v123
    %v126 = vshrl.u32 %v108, %v124
    %v127 = vor.u32 %v125, %v126
    %v128 = vsub.s32 4294967266, %v123
    %v129 = vadd.s32 %v128, 127
    %v130 = vshll.u32 %v129, 23
    %v131 = vor.u32 4788187, %v130
    %v132 = vand.u32 2147483647, %v131
    %v134 = vcvt.s32.f32 %v127
    %v135 = vmul.f32 %v134, %v132
    %v136 = vxor.u32 %v135, 2147483648
    %v137 = vsel %vm54, %v136, %v135
    %v138 = vsub.s32 4, %v114
    %v139 = vsel %vm54, %v138, %v114
    %v140 = vsel %vm53, %v50, %v137
    %v141 = vsel %vm53, 0, %v139
    %v142 = vcosq.f32.pop %v140
    %v143 = vsinq.f32.pop %v140
    %vm144 = vweird.f32 %v50
    %v145 = vand.u32 %v141, 3
    %vm146 = vcmp.lt.s32.totalorder %v145, 2
    %vm147 = vcmp.eq.s32.totalorder %v145, 0
    %v148 = vxor.u32 %v143, 2147483648
    %v149 = vsel %vm147, %v142, %v148
    %vm150 = vcmp.eq.s32.totalorder %v145, 2
    %v151 = vxor.u32 %v142, 2147483648
    %v152 = vsel %vm150, %v151, %v143
    %v153 = vsel %vm146, %v149, %v152
    %v154 = vsel %vm144, nan, %v153
    %v155 = vand.u32 2147483647, %v51
    %vm156 = vcmp.le.f32.partialorder %v155, 0.7853982
    %vm157 = vcmp.lt.s32.totalorder %v51, 0
    %v158 = vand.u32 %v51, 2139095040
    %v159 = vshrl.u32 %v158, 23
    %v160 = vsub.s32 %v159, 127
    %v161 = vand.u32 2147483647, %v51
    %v162 = vand.u32 %v161, 8388607
    %v163 = vor.u32 %v162, 8388608
    %v164 = vsub.s32 0, %v163
    %v165 = vadd.s32 %v160, 1
    %vm166 = vcmp.gt.s32.totalorder %v165, 0
    %v167 = vsel %vm166, %v165, 0
    %v168 = vshrl.u32 %v167, 5
    %v169 = vand.u32 %v167, 31
    %v170 = vsub.s32 32, %v169
    %v171 = vshrl.u32 683565275, %v170
    %v172 = vshll.u32 683565275, %v169
    %v173 = vshrl.u32 2475754826, %v170
    %v174 = vor.u32 %v172, %v173
    %v175 = vshll.u32 2475754826, %v169
    %v176 = vshrl.u32 2131351028, %v170
    %v177 = vor.u32 %v175, %v176
    %v178 = vshll.u32 2131351028, %v169
    %v179 = vshrl.u32 2102212464, %v170
    %v180 = vor.u32 %v178, %v179
    %v181 = vshll.u32 2102212464, %v169
    %v182 = vshrl.u32 920167782, %v170
    %v183 = vor.u32 %v181, %v182
    %v184 = vshll.u32 920167782, %v169
    %v185 = vshrl.u32 1326507024, %v170
    %v186 = vor.u32 %v184, %v185
    %vm187 = vcmp.lt.s32.totalorder %v168, 1
    %vm188 = vcmp.lt.s32.totalorder %v168, 2
    %vm189 = vcmp.lt.s32.totalorder %v168, 3
    %vm190 = vcmp.lt.s32.totalorder %v168, 4
    %v191 = vsel %vm187, %v171, %v174
    %v192 = vsel %vm190, %v180, 2102212464
    %v193 = vsel %vm189, %v177, %v192
    %v194 = vsel %vm188, %v191, %v193
    %v195 = vsel %vm187, %v174, %v177
    %v196 = vsel %vm190, %v183, 920167782
    %v197 = vsel %vm189, %v180, %v196
    %v198 = vsel %vm188, %v195, %v197
    %v199 = vsel %vm187, %v177, %v180
    %v200 = vsel %vm190, %v186, 1326507024
    %v201 = vsel %vm189, %v183, %v200
    %v202 = vsel %vm188, %v199, %v201
    %v203 = vshll.u32 %v163, 8
    %v204 = vmul.u32.u64.compose %v203, %v202
    %v205 = vextract.low.u32 %v204
    %v206 = vextract.high.u32 %v204
    %v207 = vmul.u32.u64.compose %v203, %v198
    %v208 = vextract.low.u32 %v207
    %v209 = vextract.high.u32 %v207
    %v210 = vmul.u32 %v203, %v194
    %v211 = vadd.s32 %v206, %v208
    %vm212 = vc.u32 %v206, %v208
    %v213 = vadd.s32 %v209, 1
    %v214 = vsel %vm212, %v213, %v209
    %v215 = vadd.s32 %v210, %v214
    %v216 = vadd.s32 %v215, 536870912
    %v217 = vshrl.u32 %v216, 30
    %v218 = vshll.u32 %v217, 30
    %v219 = vsub.s32 %v215, %v218
    %vm220 = vcmp.lt.s32.totalorder %v219, 0
    %v221 = vsub.s32 0, %v219
    %v222 = vsel %vm220, %v221, %v219
    %v223 = vclz %v222
    %v224 = vsub.s32 %v223, 2
    %vm225 = vcmp.gt.s32.totalorder 0, %v224
    %v226 = vsel %vm225, 0, %v224
    %v227 = vsub.s32 32, %v226
    %v228 = vshll.u32 %v219, %v226
    %v229 = vshrl.u32 %v211, %v227
    %v230 = vor.u32 %v228, %v229
    %v231 = vsub.s32 4294967266, %v226
    %v232 = vadd.s32 %v231, 127
    %v233 = vshll.u32 %v232, 23
    %v234 = vor.u32 4788187, %v233
    %v235 = vand.u32 2147483647, %v234
    %v237 = vcvt.s32.f32 %v230
    %v238 = vmul.f32 %v237, %v235
    %v239 = vxor.u32 %v238, 2147483648
    %v240 = vsel %vm157, %v239, %v238
    %v241 = vsub.s32 4, %v217
    %v242 = vsel %vm157, %v241, %v217
    %v243 = vsel %vm156, %v51, %v240
    %v244 = vsel %vm156, 0, %v242
    %v245 = vcosq.f32.pop %v243
    %v246 = vsinq.f32.pop %v243
    %vm247 = vweird.f32 %v51
    %v248 = vand.u32 %v244, 3
    %vm249 = vcmp.lt.s32.totalorder %v248, 2
    %vm250 = vcmp.eq.s32.totalorder %v248, 0
    %v251 = vxor.u32 %v246, 2147483648
    %v252 = vsel %vm250, %v245, %v251
    %vm253 = vcmp.eq.s32.totalorder %v248, 2
    %v254 = vxor.u32 %v245, 2147483648
    %v255 = vsel %vm253, %v254, %v246
    %v256 = vsel %vm249, %v252, %v255
    %v257 = vsel %vm247, nan, %v256
    %v258 = vand.u32 2147483647, %v50
    %vm259 = vcmp.le.f32.partialorder %v258, 0.7853982
    %vm260 = vcmp.lt.s32.totalorder %v50, 0
    %v261 = vand.u32 %v50, 2139095040
    %v262 = vshrl.u32 %v261, 23
    %v263 = vsub.s32 %v262, 127
    %v264 = vand.u32 2147483647, %v50
    %v265 = vand.u32 %v264, 8388607
    %v266 = vor.u32 %v265, 8388608
    %v267 = vsub.s32 0, %v266
    %v268 = vadd.s32 %v263, 1
    %vm269 = vcmp.gt.s32.totalorder %v268, 0
    %v270 = vsel %vm269, %v268, 0
    %v271 = vshrl.u32 %v270, 5
    %v272 = vand.u32 %v270, 31
    %v273 = vsub.s32 32, %v272
    %v274 = vshrl.u32 683565275, %v273
    %v275 = vshll.u32 683565275, %v272
    %v276 = vshrl.u32 2475754826, %v273
    %v277 = vor.u32 %v275, %v276
    %v278 = vshll.u32 2475754826, %v272
    %v279 = vshrl.u32 2131351028, %v273
    %v280 = vor.u32 %v278, %v279
    %v281 = vshll.u32 2131351028, %v272
    %v282 = vshrl.u32 2102212464, %v273
    %v283 = vor.u32 %v281, %v282
    %v284 = vshll.u32 2102212464, %v272
    %v285 = vshrl.u32 920167782, %v273
    %v286 = vor.u32 %v284, %v285
    %v287 = vshll.u32 920167782, %v272
    %v288 = vshrl.u32 1326507024, %v273
    %v289 = vor.u32 %v287, %v288
    %vm290 = vcmp.lt.s32.totalorder %v271, 1
    %vm291 = vcmp.lt.s32.totalorder %v271, 2
    %vm292 = vcmp.lt.s32.totalorder %v271, 3
    %vm293 = vcmp.lt.s32.totalorder %v271, 4
    %v294 = vsel %vm290, %v274, %v277
    %v295 = vsel %vm293, %v283, 2102212464
    %v296 = vsel %vm292, %v280, %v295
    %v297 = vsel %vm291, %v294, %v296
    %v298 = vsel %vm290, %v277, %v280
    %v299 = vsel %vm293, %v286, 920167782
    %v300 = vsel %vm292, %v283, %v299
    %v301 = vsel %vm291, %v298, %v300
    %v302 = vsel %vm290, %v280, %v283
    %v303 = vsel %vm293, %v289, 1326507024
    %v304 = vsel %vm292, %v286, %v303
    %v305 = vsel %vm291, %v302, %v304
    %v306 = vshll.u32 %v266, 8
    %v307 = vmul.u32.u64.compose %v306, %v305
    %v308 = vextract.low.u32 %v307
    %v309 = vextract.high.u32 %v307
    %v310 = vmul.u32.u64.compose %v306, %v301
    %v311 = vextract.low.u32 %v310
    %v312 = vextract.high.u32 %v310
    %v313 = vmul.u32 %v306, %v297
    %v314 = vadd.s32 %v309, %v311
    %vm315 = vc.u32 %v309, %v311
    %v316 = vadd.s32 %v312, 1
    %v317 = vsel %vm315, %v316, %v312
    %v318 = vadd.s32 %v313, %v317
    %v319 = vadd.s32 %v318, 536870912
    %v320 = vshrl.u32 %v319, 30
    %v321 = vshll.u32 %v320, 30
    %v322 = vsub.s32 %v318, %v321
    %vm323 = vcmp.lt.s32.totalorder %v322, 0
    %v324 = vsub.s32 0, %v322
    %v325 = vsel %vm323, %v324, %v322
    %v326 = vclz %v325
    %v327 = vsub.s32 %v326, 2
    %vm328 = vcmp.gt.s32.totalorder 0, %v327
    %v329 = vsel %vm328, 0, %v327
    %v330 = vsub.s32 32, %v329
    %v331 = vshll.u32 %v322, %v329
    %v332 = vshrl.u32 %v314, %v330
    %v333 = vor.u32 %v331, %v332
    %v334 = vsub.s32 4294967266, %v329
    %v335 = vadd.s32 %v334, 127
    %v336 = vshll.u32 %v335, 23
    %v337 = vor.u32 4788187, %v336
    %v338 = vand.u32 2147483647, %v337
    %v340 = vcvt.s32.f32 %v333
    %v341 = vmul.f32 %v340, %v338
    %v342 = vxor.u32 %v341, 2147483648
    %v343 = vsel %vm260, %v342, %v341
    %v344 = vsub.s32 4, %v320
    %v345 = vsel %vm260, %v344, %v320
    %v346 = vsel %vm259, %v50, %v343
    %v347 = vsel %vm259, 0, %v345
    %v348 = vcosq.f32.pop %v346
    %v349 = vsinq.f32.pop %v346
    %vm350 = vweird.f32 %v50
    %v351 = vadd.s32 %v347, 3
    %v352 = vand.u32 %v351, 3
    %vm353 = vcmp.lt.s32.totalorder %v352, 2
    %vm354 = vcmp.eq.s32.totalorder %v352, 0
    %v355 = vxor.u32 %v349, 2147483648
    %v356 = vsel %vm354, %v348, %v355
    %vm357 = vcmp.eq.s32.totalorder %v352, 2
    %v358 = vxor.u32 %v348, 2147483648
    %v359 = vsel %vm357, %v358, %v349
    %v360 = vsel %vm353, %v356, %v359
    %v361 = vsel %vm350, nan, %v360
    %v362 = vand.u32 2147483647, %v51
    %vm363 = vcmp.le.f32.partialorder %v362, 0.7853982
    %vm364 = vcmp.lt.s32.totalorder %v51, 0
    %v365 = vand.u32 %v51, 2139095040
    %v366 = vshrl.u32 %v365, 23
    %v367 = vsub.s32 %v366, 127
    %v368 = vand.u32 2147483647, %v51
    %v369 = vand.u32 %v368, 8388607
    %v370 = vor.u32 %v369, 8388608
    %v371 = vsub.s32 0, %v370
    %v372 = vadd.s32 %v367, 1
    %vm373 = vcmp.gt.s32.totalorder %v372, 0
    %v374 = vsel %vm373, %v372, 0
    %v375 = vshrl.u32 %v374, 5
    %v376 = vand.u32 %v374, 31
    %v377 = vsub.s32 32, %v376
    %v378 = vshrl.u32 683565275, %v377
    %v379 = vshll.u32 683565275, %v376
    %v380 = vshrl.u32 2475754826, %v377
    %v381 = vor.u32 %v379, %v380
    %v382 = vshll.u32 2475754826, %v376
    %v383 = vshrl.u32 2131351028, %v377
    %v384 = vor.u32 %v382, %v383
    %v385 = vshll.u32 2131351028, %v376
    %v386 = vshrl.u32 2102212464, %v377
    %v387 = vor.u32 %v385, %v386
    %v388 = vshll.u32 2102212464, %v376
    %v389 = vshrl.u32 920167782, %v377
    %v390 = vor.u32 %v388, %v389
    %v391 = vshll.u32 920167782, %v376
    %v392 = vshrl.u32 1326507024, %v377
    %v393 = vor.u32 %v391, %v392
    %vm394 = vcmp.lt.s32.totalorder %v375, 1
    %vm395 = vcmp.lt.s32.totalorder %v375, 2
    %vm396 = vcmp.lt.s32.totalorder %v375, 3
    %vm397 = vcmp.lt.s32.totalorder %v375, 4
    %v398 = vsel %vm394, %v378, %v381
    %v399 = vsel %vm397, %v387, 2102212464
    %v400 = vsel %vm396, %v384, %v399
    %v401 = vsel %vm395, %v398, %v400
    %v402 = vsel %vm394, %v381, %v384
    %v403 = vsel %vm397, %v390, 920167782
    %v404 = vsel %vm396, %v387, %v403
    %v405 = vsel %vm395, %v402, %v404
    %v406 = vsel %vm394, %v384, %v387
    %v407 = vsel %vm397, %v393, 1326507024
    %v408 = vsel %vm396, %v390, %v407
    %v409 = vsel %vm395, %v406, %v408
    %v410 = vshll.u32 %v370, 8
    %v411 = vmul.u32.u64.compose %v410, %v409
    %v412 = vextract.low.u32 %v411
    %v413 = vextract.high.u32 %v411
    %v414 = vmul.u32.u64.compose %v410, %v405
    %v415 = vextract.low.u32 %v414
    %v416 = vextract.high.u32 %v414
    %v417 = vmul.u32 %v410, %v401
    %v418 = vadd.s32 %v413, %v415
    %vm419 = vc.u32 %v413, %v415
    %v420 = vadd.s32 %v416, 1
    %v421 = vsel %vm419, %v420, %v416
    %v422 = vadd.s32 %v417, %v421
    %v423 = vadd.s32 %v422, 536870912
    %v424 = vshrl.u32 %v423, 30
    %v425 = vshll.u32 %v424, 30
    %v426 = vsub.s32 %v422, %v425
    %vm427 = vcmp.lt.s32.totalorder %v426, 0
    %v428 = vsub.s32 0, %v426
    %v429 = vsel %vm427, %v428, %v426
    %v430 = vclz %v429
    %v431 = vsub.s32 %v430, 2
    %vm432 = vcmp.gt.s32.totalorder 0, %v431
    %v433 = vsel %vm432, 0, %v431
    %v434 = vsub.s32 32, %v433
    %v435 = vshll.u32 %v426, %v433
    %v436 = vshrl.u32 %v418, %v434
    %v437 = vor.u32 %v435, %v436
    %v438 = vsub.s32 4294967266, %v433
    %v439 = vadd.s32 %v438, 127
    %v440 = vshll.u32 %v439, 23
    %v441 = vor.u32 4788187, %v440
    %v442 = vand.u32 2147483647, %v441
    %v444 = vcvt.s32.f32 %v437
    %v445 = vmul.f32 %v444, %v442
    %v446 = vxor.u32 %v445, 2147483648
    %v447 = vsel %vm364, %v446, %v445
    %v448 = vsub.s32 4, %v424
    %v449 = vsel %vm364, %v448, %v424
    %v450 = vsel %vm363, %v51, %v447
    %v451 = vsel %vm363, 0, %v449
    %v452 = vcosq.f32.pop %v450
    %v453 = vsinq.f32.pop %v450
    %vm454 = vweird.f32 %v51
    %v455 = vadd.s32 %v451, 3
    %v456 = vand.u32 %v455, 3
    %vm457 = vcmp.lt.s32.totalorder %v456, 2
    %vm458 = vcmp.eq.s32.totalorder %v456, 0
    %v459 = vxor.u32 %v453, 2147483648
    %v460 = vsel %vm458, %v452, %v459
    %vm461 = vcmp.eq.s32.totalorder %v456, 2
    %v462 = vxor.u32 %v452, 2147483648
    %v463 = vsel %vm461, %v462, %v453
    %v464 = vsel %vm457, %v460, %v463
    %v465 = vsel %vm454, nan, %v464
    %v466 = vpack.c.bf16 %v257, %v154
    %v467 = vpack.c.bf16 %v465, %v361
    %v468 = vld [vmem:[%s4] sm:$0xf]
    %v469 = vld [vmem:[%s4 + $0x4] sm:$0xf]
    %v470 = vld [vmem:[%s4 + $0x8] sm:$0xf]
    %v471 = vld [vmem:[%s4 + $0xc] sm:$0xf]
    %v472 = vld [vmem:[%s4 + $0x10] sm:$0xf]
    %v473 = vld [vmem:[%s4 + $0x14] sm:$0xf]
    %v474 = vld [vmem:[%s4 + $0x18] sm:$0xf]
    %v475 = vld [vmem:[%s4 + $0x1c] sm:$0xf]
    %v476 = vld [vmem:[%s4 + $0x20] sm:$0xf]
    %v477 = vld [vmem:[%s4 + $0x24] sm:$0xf]
    %v478 = vld [vmem:[%s4 + $0x28] sm:$0xf]
    %v479 = vld [vmem:[%s4 + $0x2c] sm:$0xf]
    %v480 = vld [vmem:[%s4 + $0x30] sm:$0xf]
    %v481 = vld [vmem:[%s4 + $0x34] sm:$0xf]
    %v482 = vld [vmem:[%s4 + $0x38] sm:$0xf]
    %v483 = vld [vmem:[%s4 + $0x3c] sm:$0xf]
    %v484 = vld [vmem:[%s4 + $0x40] sm:$0xf]
    %v485 = vld [vmem:[%s4 + $0x44] sm:$0xf]
    %v486 = vld [vmem:[%s4 + $0x48] sm:$0xf]
    %v487 = vld [vmem:[%s4 + $0x4c] sm:$0xf]
    %v488 = vld [vmem:[%s4 + $0x50] sm:$0xf]
    %v489 = vld [vmem:[%s4 + $0x54] sm:$0xf]
    %v490 = vld [vmem:[%s4 + $0x58] sm:$0xf]
    %v491 = vld [vmem:[%s4 + $0x5c] sm:$0xf]
    %v492 = vld [vmem:[%s4 + $0x60] sm:$0xf]
    %v493 = vld [vmem:[%s4 + $0x64] sm:$0xf]
    %v494 = vld [vmem:[%s4 + $0x68] sm:$0xf]
    %v495 = vld [vmem:[%s4 + $0x6c] sm:$0xf]
    %v496 = vld [vmem:[%s4 + $0x70] sm:$0xf]
    %v497 = vld [vmem:[%s4 + $0x74] sm:$0xf]
    %v498 = vld [vmem:[%s4 + $0x78] sm:$0xf]
    %v499 = vld [vmem:[%s4 + $0x7c] sm:$0xf]
    %v500 = vld [vmem:[%s5] sm:$0x1]
    %v502 = vlaneseq
    %v503 = vshrl.u32 %v502, 7
    %v504 = vsub.s32 0, %v503
    %v505 = vrot.slane %v500, %v504
    %v539 = vunpack.c.l.b16 %v468
    %v540 = vunpack.c.l.b16 %v469
    %v541 = vunpack.c.l.b16 %v470
    %v542 = vunpack.c.l.b16 %v471
    %v543 = vunpack.c.l.b16 %v472
    %v544 = vunpack.c.l.b16 %v473
    %v545 = vunpack.c.l.b16 %v474
    %v546 = vunpack.c.l.b16 %v475
    %v547 = vunpack.c.l.b16 %v476
    %v548 = vunpack.c.l.b16 %v477
    %v549 = vunpack.c.l.b16 %v478
    %v550 = vunpack.c.l.b16 %v479
    %v551 = vunpack.c.l.b16 %v480
    %v552 = vunpack.c.l.b16 %v481
    %v553 = vunpack.c.l.b16 %v482
    %v554 = vunpack.c.l.b16 %v483
    %v555 = vunpack.c.l.b16 %v484
    %v556 = vunpack.c.l.b16 %v485
    %v557 = vunpack.c.l.b16 %v486
    %v558 = vunpack.c.l.b16 %v487
    %v559 = vunpack.c.l.b16 %v488
    %v560 = vunpack.c.l.b16 %v489
    %v561 = vunpack.c.l.b16 %v490
    %v562 = vunpack.c.l.b16 %v491
    %v563 = vunpack.c.l.b16 %v492
    %v564 = vunpack.c.l.b16 %v493
    %v565 = vunpack.c.l.b16 %v494
    %v566 = vunpack.c.l.b16 %v495
    %v567 = vunpack.c.l.b16 %v496
    %v568 = vunpack.c.l.b16 %v497
    %v569 = vunpack.c.l.b16 %v498
    %v570 = vunpack.c.l.b16 %v499
    %v571 = vpack.c.b16 %v540, %v539
    %v572 = vpack.c.b16 %v542, %v541
    %v573 = vpack.c.b16 %v544, %v543
    %v574 = vpack.c.b16 %v546, %v545
    %v575 = vpack.c.b16 %v548, %v547
    %v576 = vpack.c.b16 %v550, %v549
    %v577 = vpack.c.b16 %v552, %v551
    %v578 = vpack.c.b16 %v554, %v553
    %v579 = vpack.c.b16 %v556, %v555
    %v580 = vpack.c.b16 %v558, %v557
    %v581 = vpack.c.b16 %v560, %v559
    %v582 = vpack.c.b16 %v562, %v561
    %v583 = vpack.c.b16 %v564, %v563
    %v584 = vpack.c.b16 %v566, %v565
    %v585 = vpack.c.b16 %v568, %v567
    %v586 = vpack.c.b16 %v570, %v569
    %603 = vmatprep.subr.bf16.mxu0 0
    %604 = vmatpush1.bf16.msra.mxu0 %v578
    %605 = vmatprep.subr.bf16.mxu0 0
    %606 = vmatpush1.bf16.msra.mxu0 %v577
    %607 = vmatprep.subr.bf16.mxu0 0
    %608 = vmatpush1.bf16.msra.mxu0 %v576
    %609 = vmatprep.subr.bf16.mxu0 0
    %610 = vmatpush1.bf16.msra.mxu0 %v575
    %611 = vmatprep.subr.bf16.mxu0 0
    %612 = vmatpush1.bf16.msra.mxu0 %v574
    %613 = vmatprep.subr.bf16.mxu0 0
    %614 = vmatpush1.bf16.msra.mxu0 %v573
    %615 = vmatprep.subr.bf16.mxu0 0
    %616 = vmatpush1.bf16.msra.mxu0 %v572
    %617 = vmatprep.subr.bf16.mxu0 0
    %618 = vmatpush1.bf16.msra.mxu0 %v571
    %619 = vmatprep.subr.bf16.mxu0 0
    %620 = vmatpush2.bf16.msra.mxu0 %v586
    %621 = vmatprep.subr.bf16.mxu0 0
    %622 = vmatpush2.bf16.msra.mxu0 %v585
    %623 = vmatprep.subr.bf16.mxu0 0
    %624 = vmatpush2.bf16.msra.mxu0 %v584
    %625 = vmatprep.subr.bf16.mxu0 0
    %626 = vmatpush2.bf16.msra.mxu0 %v583
    %627 = vmatprep.subr.bf16.mxu0 0
    %628 = vmatpush2.bf16.msra.mxu0 %v582
    %629 = vmatprep.subr.bf16.mxu0 0
    %630 = vmatpush2.bf16.msra.mxu0 %v581
    %631 = vmatprep.subr.bf16.mxu0 0
    %632 = vmatpush2.bf16.msra.mxu0 %v580
    %633 = vmatprep.subr.bf16.mxu0 0
    %634 = vmatpush2.bf16.msra.mxu0 %v579
    %635 = vmatprep.mubr.bf16.mxu0 %v467
    %636 = vmatmul.mubr.bf16.gmra.mxu0 %v466
    %v637 = vpop.f32.mrf.mxu0
    %v638 = vadd.f32 %v505, %v637
    %v639 = vpop.f32.mrf.mxu0
    %v640 = vpop.f32.mrf.mxu0
    %v641 = vadd.f32 %v505, %v640
    %v642 = vpop.f32.mrf.mxu0
    %643 = vdwg.mxu0
    %v644 = vxor.u32 %v638, 2147483648
    %v645 = vxor.u32 %v641, 2147483648
    %v646 = vmul.f32 %v644, 1.442695
    %v647 = vpow.pop %v646
    %v648 = vmul.f32 %v645, 1.442695
    %v649 = vpow.pop %v648
    %v650 = vadd.f32 %v647, 1.0
    %v651 = vadd.f32 %v649, 1.0
    %v652 = vrcp.pop %v650
    %v653 = vmul.f32 1.0, %v652
    %v654 = vrcp.pop %v651
    %v655 = vmul.f32 1.0, %v654
    %v656 = vmul.f32 %v638, %v653
    %v657 = vmul.f32 %v641, %v655
    %v658 = vpack.c.bf16 %v657, %v656
    %v659 = vld [vmem:[%s6] sm:$0xf]
    %v660 = vld [vmem:[%s6 + $0x4] sm:$0xf]
    %v661 = vld [vmem:[%s6 + $0x8] sm:$0xf]
    %v662 = vld [vmem:[%s6 + $0xc] sm:$0xf]
    %v667 = vunpack.c.l.b16 %v659
    %v668 = vunpack.c.l.b16 %v660
    %v669 = vunpack.c.l.b16 %v661
    %v670 = vunpack.c.l.b16 %v662
    %v671 = vpack.c.b16 %v668, %v667
    %v672 = vpack.c.b16 %v670, %v669
    %vm675 = vcmask 261120
    %v677 = vsel %vm675, %v658, 0
    %679 = vmatprep.subr.bf16.mxu0 0
    %680 = vmatpush1.bf16.msra.mxu0 0
    %681 = vmatprep.subr.bf16.mxu0 0
    %682 = vmatpush1.bf16.msra.mxu0 0
    %683 = vmatprep.subr.bf16.mxu0 0
    %684 = vmatpush1.bf16.msra.mxu0 0
    %685 = vmatprep.subr.bf16.mxu0 0
    %686 = vmatpush1.bf16.msra.mxu0 0
    %687 = vmatprep.subr.bf16.mxu0 0
    %688 = vmatpush1.bf16.msra.mxu0 0
    %689 = vmatprep.subr.bf16.mxu0 0
    %690 = vmatpush1.bf16.msra.mxu0 0
    %691 = vmatprep.subr.bf16.mxu0 0
    %692 = vmatpush1.bf16.msra.mxu0 %v672
    %693 = vmatprep.subr.bf16.mxu0 0
    %694 = vmatpush1.bf16.msra.mxu0 %v671
    %695 = vmatprep.subr.bf16.mxu0 0
    %696 = vmatpush2.bf16.msra.mxu0 0
    %697 = vmatprep.subr.bf16.mxu0 0
    %698 = vmatpush2.bf16.msra.mxu0 0
    %699 = vmatprep.subr.bf16.mxu0 0
    %700 = vmatpush2.bf16.msra.mxu0 0
    %701 = vmatprep.subr.bf16.mxu0 0
    %702 = vmatpush2.bf16.msra.mxu0 0
    %703 = vmatprep.subr.bf16.mxu0 0
    %704 = vmatpush2.bf16.msra.mxu0 0
    %705 = vmatprep.subr.bf16.mxu0 0
    %706 = vmatpush2.bf16.msra.mxu0 0
    %707 = vmatprep.subr.bf16.mxu0 0
    %708 = vmatpush2.bf16.msra.mxu0 0
    %709 = vmatprep.subr.bf16.mxu0 0
    %710 = vmatpush2.bf16.msra.mxu0 0
    %711 = vmatprep.mubr.bf16.mxu0 0
    %712 = vmatmul.mubr.bf16.gmra.mxu0 %v677
    %v713 = vpop.f32.mrf.mxu0
    %v714 = vadd.f32 0.0, %v713
    %v715 = vpop.f32.mrf.mxu0
    %v716 = vpop.f32.mrf.mxu0
    %v717 = vadd.f32 0.0, %v716
    %v718 = vpop.f32.mrf.mxu0
    %719 = vdwg.mxu0
    %v720 = vld [vmem:[%s0] sm:$0xff]
    %v721 = vld [vmem:[%s0 + $0x8] sm:$0xff]
    %v722 = vpack.c.bf16 %v721, %v720
    %v723 = vld [vmem:[%s3] sm:$0xf]
    %v724 = vld [vmem:[%s3 + $0x4] sm:$0xf]
    %v725 = vld [vmem:[%s3 + $0x8] sm:$0xf]
    %v726 = vld [vmem:[%s3 + $0xc] sm:$0xf]
    %v731 = vunpack.c.l.b16 %v723
    %v732 = vunpack.c.l.b16 %v724
    %v733 = vunpack.c.l.b16 %v725
    %v734 = vunpack.c.l.b16 %v726
    %v735 = vpack.c.b16 %v732, %v731
    %v736 = vpack.c.b16 %v734, %v733
    %v740 = vsel %vm675, %v722, 0
    %742 = vmatprep.subr.bf16.mxu0 0
    %743 = vmatpush1.bf16.msra.mxu0 0
    %744 = vmatprep.subr.bf16.mxu0 0
    %745 = vmatpush1.bf16.msra.mxu0 0
    %746 = vmatprep.subr.bf16.mxu0 0
    %747 = vmatpush1.bf16.msra.mxu0 0
    %748 = vmatprep.subr.bf16.mxu0 0
    %749 = vmatpush1.bf16.msra.mxu0 0
    %750 = vmatprep.subr.bf16.mxu0 0
    %751 = vmatpush1.bf16.msra.mxu0 0
    %752 = vmatprep.subr.bf16.mxu0 0
    %753 = vmatpush1.bf16.msra.mxu0 0
    %754 = vmatprep.subr.bf16.mxu0 0
    %755 = vmatpush1.bf16.msra.mxu0 %v736
    %756 = vmatprep.subr.bf16.mxu0 0
    %757 = vmatpush1.bf16.msra.mxu0 %v735
    %758 = vmatprep.subr.bf16.mxu0 0
    %759 = vmatpush2.bf16.msra.mxu0 0
    %760 = vmatprep.subr.bf16.mxu0 0
    %761 = vmatpush2.bf16.msra.mxu0 0
    %762 = vmatprep.subr.bf16.mxu0 0
    %763 = vmatpush2.bf16.msra.mxu0 0
    %764 = vmatprep.subr.bf16.mxu0 0
    %765 = vmatpush2.bf16.msra.mxu0 0
    %766 = vmatprep.subr.bf16.mxu0 0
    %767 = vmatpush2.bf16.msra.mxu0 0
    %768 = vmatprep.subr.bf16.mxu0 0
    %769 = vmatpush2.bf16.msra.mxu0 0
    %770 = vmatprep.subr.bf16.mxu0 0
    %771 = vmatpush2.bf16.msra.mxu0 0
    %772 = vmatprep.subr.bf16.mxu0 0
    %773 = vmatpush2.bf16.msra.mxu0 0
    %774 = vmatprep.mubr.bf16.mxu0 0
    %775 = vmatmul.mubr.bf16.gmra.mxu0 %v740
    %v776 = vpop.f32.mrf.mxu0
    %v777 = vadd.f32 %v714, %v776
    %v778 = vpop.f32.mrf.mxu0
    %v779 = vpop.f32.mrf.mxu0
    %v780 = vadd.f32 %v717, %v779
    %v781 = vpop.f32.mrf.mxu0
    %782 = vdwg.mxu0
    %v783 = vld [vmem:[%s7] sm:$0x1]
    %v785 = vlaneseq
    %v786 = vshrl.u32 %v785, 7
    %v787 = vsub.s32 0, %v786
    %v788 = vrot.slane %v783, %v787
    %v790 = vadd.f32 %v777, %v788
    %v791 = vadd.f32 %v780, %v788
    %792 = vst.msk [vmem:[#allocation2] sm:$0xff] %vm675, %v790
    %793 = vst.msk [vmem:[#allocation2 + $0x8] sm:$0xff] %vm675, %v791
    // Predicated region
    $region34: #{tpu_custom_call.1} parent=1 // pred_check
      _
    $region35: #{tpu_custom_call.1} parent=1 // pred_check_branch
      %795 = sbr.rel (0) target = $region37
    $region36: #{tpu_custom_call.1} parent=1 // pred_region
      %s797 = ssub.s32 256, 256
      %798 = vsyncadd [#allocation3], %s797
      %s799 = sshll.u32 [#allocation2], 4
      %s800 = int_to_ptr.vmem [resolvable:$true] %s799
      %805 = dma.vmem_to_hbm [thread:$0]  %s800, 256, %s8, [#allocation3], 128, 128, 8
    $region37: #{tpu_custom_call.1} parent=1 // pred_fallthru
      _
    // Predicated region
    $region38: #{tpu_custom_call.1} parent=1 // pred_check
      _
    $region39: #{tpu_custom_call.1} parent=1 // pred_check_branch
      %807 = sbr.rel (0) target = $region41
    $region40: #{tpu_custom_call.1} parent=1 // pred_region
      %808 = dma.done [#allocation3], 256
    $region41: #{tpu_custom_call.1} parent=1 // pred_fallthru
      _
    %809 = vsyncpa [#allocation3], 1

</llo_original>
